<compile_context>
chip_gen: v5e
topology: v5e:2x2
jax: 0.10.0
libtpu: 0.0.40
codegen_flags: <defaults>
</compile_context>

<pallas_src>
import functools

import jax
import jax.numpy as jnp
from jax.experimental import pallas as pl
from jax.experimental.pallas import tpu as pltpu

NUM_CLASSES = 10
HIDDEN = 50
LANE = 128


def _round_up(n, m):
    return (n + m - 1) // m * m


def _mlp_kernel(x_ref, w1_ref, b1_ref, w2_ref, b2_ref, o_ref):
    # fc1 + bias + ReLU (f32 accumulation on the MXU, epilogue on the VPU).
    h = jnp.dot(x_ref[...], w1_ref[...], preferred_element_type=jnp.float32)
    h = jnp.maximum(h + b1_ref[...], 0.0)
    # fc2 + bias. Padded hidden columns are exactly zero (zero bias, zero w2
    # rows), so they contribute nothing to the output.
    out = jnp.dot(h, w2_ref[...], preferred_element_type=jnp.float32)
    o_ref[...] = (out + b2_ref[...]).astype(o_ref.dtype)


def _pick_batch_tile(B, D, tb_max, hp, cp):
    """Largest batch tile <= tb_max whose double-buffered footprint fits ~12 MiB."""
    weight_bytes = (D * hp + hp + hp * cp + cp) * 4
    tb = _round_up(max(8, min(tb_max, _round_up(B, 8))), 8)
    budget = 12 << 20  # conservative: fits v5e's 16 MiB default scoped VMEM
    while tb > 8:
        tile_bytes = tb * (D + cp) * 4            # one x tile + one out tile
        if 2 * tile_bytes + weight_bytes <= budget:
            break
        tb = _round_up(tb // 2, 8)
    return tb, weight_bytes


@functools.partial(jax.jit, static_argnames=("tb",))
def nn_forward(x, w1, b1, w2, b2, *, tb=512):
    """x: (B, D) f32; w1: (D, H); b1: (H,) or (1, H); w2: (H, C); b2: (C,) or (1, C)."""
    B, D = x.shape
    H = w1.shape[1]
    C = w2.shape[1]
    HP = _round_up(H, LANE)
    CP = _round_up(C, LANE)

    TB, weight_bytes = _pick_batch_tile(B, D, tb, HP, CP)
    B_pad = _round_up(B, TB)

    # Zero-pad narrow lane dims to 128; zero-pad the extra rows of w2 so the
    # padded hidden columns cannot leak into the output.
    xp = jnp.pad(x.astype(jnp.float32), ((0, B_pad - B), (0, 0)))
    w1p = jnp.pad(w1.astype(jnp.float32), ((0, 0), (0, HP - H)))
    b1p = jnp.pad(b1.reshape(1, -1).astype(jnp.float32), ((0, 0), (0, HP - H)))
    w2p = jnp.pad(w2.astype(jnp.float32), ((0, HP - H), (0, CP - C)))
    b2p = jnp.pad(b2.reshape(1, -1).astype(jnp.float32), ((0, 0), (0, CP - C)))

    # VMEM limit derived from the actual double-buffered footprint (+headroom),
    # capped at 32 MiB so it is always safe on v7x's 64 MiB physical VMEM.
    tile_bytes = TB * (D + CP) * 4
    vmem_needed = 2 * tile_bytes + weight_bytes
    vmem_limit = min(max(2 * vmem_needed + (2 << 20), 16 << 20), 32 << 20)

    cost = pl.CostEstimate(
        flops=2 * B * (D * H + H * C),
        transcendentals=0,
        bytes_accessed=4 * (B * D + D * H + H * C + B * C),
    )

    out = pl.pallas_call(
        _mlp_kernel,
        out_shape=jax.ShapeDtypeStruct((B_pad, CP), jnp.float32),
        grid=(B_pad // TB,),
        in_specs=[
            pl.BlockSpec((TB, D), lambda i: (i, 0)),     # x streamed over batch
            pl.BlockSpec((D, HP), lambda i: (0, 0)),     # weights stay VMEM-resident
            pl.BlockSpec((1, HP), lambda i: (0, 0)),
            pl.BlockSpec((HP, CP), lambda i: (0, 0)),
            pl.BlockSpec((1, CP), lambda i: (0, 0)),
        ],
        out_specs=pl.BlockSpec((TB, CP), lambda i: (i, 0)),
        compiler_params=pltpu.CompilerParams(
            dimension_semantics=("parallel",),
            vmem_limit_bytes=vmem_limit,
        ),
        cost_estimate=cost,
    )(xp, w1p, b1p, w2p, b2p)

    return out[:B, :C]


def init_params(key, input_size, num_classes):
    """Deterministic init mirroring PyTorch nn.Linear default (uniform +/- 1/sqrt(fan_in))."""
    k1, k2, k3, k4 = jax.random.split(key, 4)
    bound1 = 1.0 / jnp.sqrt(input_size)
    bound2 = 1.0 / jnp.sqrt(HIDDEN)
    # Stored transposed relative to PyTorch (.weight is (out, in)); we use (in, out).
    w1 = jax.random.uniform(k1, (input_size, HIDDEN), jnp.float32, -bound1, bound1)
    b1 = jax.random.uniform(k2, (1, HIDDEN), jnp.float32, -bound1, bound1)
    w2 = jax.random.uniform(k3, (HIDDEN, num_classes), jnp.float32, -bound2, bound2)
    b2 = jax.random.uniform(k4, (1, num_classes), jnp.float32, -bound2, bound2)
    return w1, b1, w2, b2


if __name__ == "__main__":
    key = jax.random.PRNGKey(0)
    kx, kp, kx2 = jax.random.split(key, 3)

    batch = 8
    input_size = 64  # flattened feature size fed to fc1

    x = jax.random.normal(kx, (batch, input_size), dtype=jnp.float32)
    w1, b1, w2, b2 = init_params(kp, input_size, NUM_CLASSES)

    # Small-batch path (single tile).
    out = jax.block_until_ready(nn_forward(x, w1, b1, w2, b2))
    ref = jnp.maximum(x @ w1 + b1, 0.0) @ w2 + b2
    assert out.shape == (batch, NUM_CLASSES)
    assert jnp.allclose(out, ref, atol=1e-5, rtol=1e-5)

    # Multi-tile path: batch not a multiple of the tile, forces grid > 1 and
    # batch padding (tb=64 -> B_pad=256, grid=(4,)).
    x2 = jax.random.normal(kx2, (200, input_size), dtype=jnp.float32)
    out2 = jax.block_until_ready(nn_forward(x2, w1, b1, w2, b2, tb=64))
    ref2 = jnp.maximum(x2 @ w1 + b1, 0.0) @ w2 + b2
    assert out2.shape == (200, NUM_CLASSES)
    assert jnp.allclose(out2, ref2, atol=1e-5, rtol=1e-5)

    print("KERNEL_OK")
</pallas_src>

<mosaic_0001>
module attributes {stable_mosaic.version = 11 : i64} {
  func.func @_mlp_kernel(%arg0: i32, %arg1: memref<8x64xf32, #tpu.memory_space<vmem>>, %arg2: memref<64x128xf32, #tpu.memory_space<vmem>>, %arg3: memref<1x128xf32, #tpu.memory_space<vmem>>, %arg4: memref<128x128xf32, #tpu.memory_space<vmem>>, %arg5: memref<1x128xf32, #tpu.memory_space<vmem>>, %arg6: memref<8x128xf32, #tpu.memory_space<vmem>>) attributes {dimension_semantics = [#tpu.dimension_semantics<parallel>], iteration_bounds = array<i64: 1>, scalar_prefetch = 0 : i64, scratch_operands = 0 : i64, tpu.core_type = #tpu.core_type<tc>, window_params = [{transform_indices = @transform_0, window_bounds = array<i64: 8, 64>}, {pipeline_mode = #tpu.pipeline_mode<synchronous>, transform_indices = @transform_1, window_bounds = array<i64: 64, 128>}, {pipeline_mode = #tpu.pipeline_mode<synchronous>, transform_indices = @transform_2, window_bounds = array<i64: 1, 128>}, {pipeline_mode = #tpu.pipeline_mode<synchronous>, transform_indices = @transform_3, window_bounds = array<i64: 128, 128>}, {pipeline_mode = #tpu.pipeline_mode<synchronous>, transform_indices = @transform_4, window_bounds = array<i64: 1, 128>}, {transform_indices = @transform_5, window_bounds = array<i64: 8, 128>}]} {
    %c0 = arith.constant 0 : index
    %c0_0 = arith.constant 0 : index
    %0 = vector.load %arg1[%c0, %c0_0] : memref<8x64xf32, #tpu.memory_space<vmem>>, vector<8x64xf32>
    %c0_1 = arith.constant 0 : index
    %c0_2 = arith.constant 0 : index
    %1 = vector.load %arg2[%c0_1, %c0_2] : memref<64x128xf32, #tpu.memory_space<vmem>>, vector<64x128xf32>
    %cst = arith.constant dense<0.000000e+00> : vector<8x128xf32>
    %2 = tpu.matmul %0, %1, %cst {dimension_numbers = #tpu.dot_dimension_numbers<[1], [0], [0], [1], [0, 0, 1, 1], [], []>} : vector<8x64xf32>, vector<64x128xf32>, vector<8x128xf32> -> vector<8x128xf32>
    %c0_3 = arith.constant 0 : index
    %c0_4 = arith.constant 0 : index
    %3 = vector.load %arg3[%c0_3, %c0_4] : memref<1x128xf32, #tpu.memory_space<vmem>>, vector<1x128xf32>
    %4 = vector.broadcast %3 : vector<1x128xf32> to vector<8x128xf32>
    %5 = arith.addf %2, %4 : vector<8x128xf32>
    %cst_5 = arith.constant 0.000000e+00 : f32
    %6 = vector.broadcast %cst_5 : f32 to vector<8x128xf32>
    %7 = arith.maximumf %5, %6 : vector<8x128xf32>
    %c0_6 = arith.constant 0 : index
    %c0_7 = arith.constant 0 : index
    %8 = vector.load %arg4[%c0_6, %c0_7] : memref<128x128xf32, #tpu.memory_space<vmem>>, vector<128x128xf32>
    %cst_8 = arith.constant dense<0.000000e+00> : vector<8x128xf32>
    %9 = tpu.matmul %7, %8, %cst_8 {dimension_numbers = #tpu.dot_dimension_numbers<[1], [0], [0], [1], [0, 0, 1, 1], [], []>} : vector<8x128xf32>, vector<128x128xf32>, vector<8x128xf32> -> vector<8x128xf32>
    %c0_9 = arith.constant 0 : index
    %c0_10 = arith.constant 0 : index
    %10 = vector.load %arg5[%c0_9, %c0_10] : memref<1x128xf32, #tpu.memory_space<vmem>>, vector<1x128xf32>
    %11 = vector.broadcast %10 : vector<1x128xf32> to vector<8x128xf32>
    %12 = arith.addf %9, %11 : vector<8x128xf32>
    %c0_11 = arith.constant 0 : index
    %c0_12 = arith.constant 0 : index
    %13 = vector.load %arg6[%c0_11, %c0_12] : memref<8x128xf32, #tpu.memory_space<vmem>>, vector<8x128xf32>
    tpu.vector_store %arg6[%c0_11, %c0_12], %12 {strides = array<i32>} : memref<8x128xf32, #tpu.memory_space<vmem>>, vector<8x128xf32>,
    return
  }
  func.func @transform_0(%arg0: i32) -> (i32, i32) {
    %c0_i32 = arith.constant 0 : i32
    %c0_i32_0 = arith.constant 0 : i32
    return %arg0, %c0_i32 : i32, i32
  }
  func.func @transform_1(%arg0: i32) -> (i32, i32) {
    %c0_i32 = arith.constant 0 : i32
    %c0_i32_0 = arith.constant 0 : i32
    %c0_i32_1 = arith.constant 0 : i32
    return %c0_i32, %c0_i32_0 : i32, i32
  }
  func.func @transform_2(%arg0: i32) -> (i32, i32) {
    %c0_i32 = arith.constant 0 : i32
    %c0_i32_0 = arith.constant 0 : i32
    %c0_i32_1 = arith.constant 0 : i32
    return %c0_i32, %c0_i32_0 : i32, i32
  }
  func.func @transform_3(%arg0: i32) -> (i32, i32) {
    %c0_i32 = arith.constant 0 : i32
    %c0_i32_0 = arith.constant 0 : i32
    %c0_i32_1 = arith.constant 0 : i32
    return %c0_i32, %c0_i32_0 : i32, i32
  }
  func.func @transform_4(%arg0: i32) -> (i32, i32) {
    %c0_i32 = arith.constant 0 : i32
    %c0_i32_0 = arith.constant 0 : i32
    %c0_i32_1 = arith.constant 0 : i32
    return %c0_i32, %c0_i32_0 : i32, i32
  }
  func.func @transform_5(%arg0: i32) -> (i32, i32) {
    %c0_i32 = arith.constant 0 : i32
    %c0_i32_0 = arith.constant 0 : i32
    return %arg0, %c0_i32 : i32, i32
  }
}

</mosaic_0001>

<llo_original>
// kernel: nn_forward.1
$region0: #{nn_forward.1}
  #allocation0 [shape = 'u32[]', space=smem, size = 0x4, offset = 0x4, fixed_abs, tag = 'smem constant byte address 0x4 - core index']
  #allocation1 [shape = 'u32[72,128]{1,0:T(1,128)}', space=vmem, size = 0x9000, scoped, tag = 'internal scratch']
  %s0 = inlined_call_operand.vmem [shape: f32[8,64], index: 0, kind: input, shape index: {}]
  %s1 = inlined_call_operand.vmem [shape: f32[64,128], index: 1, kind: input, shape index: {}]
  %s2 = inlined_call_operand.vmem [shape: f32[1,128], index: 2, kind: input, shape index: {}]
  %s3 = inlined_call_operand.vmem [shape: f32[128,128], index: 3, kind: input, shape index: {}]
  %s4 = inlined_call_operand.vmem [shape: f32[1,128], index: 4, kind: input, shape index: {}]
  %s5 = inlined_call_operand.hbm [shape: f32[8,128], index: 5, kind: output, shape index: {}]
  %s6 = sld [smem:[#allocation0]]
  $region30: #{nn_forward.1} parent=0
    _
  %s8 = ssub.s32 1, %s6
  %s9 = scalar_select 0, %s8, %s6
  $region1: #{nn_forward.1} parent=0
    #allocation2 [shape = 'u8[4096]{0}', space=vmem, size = 0x1000, scoped, tag = 'output window, operand 0, single buffered']
    #allocation3 [shape = 's32[1]{0}', space=sflag, size = 0x4, scoped, tag = 'scoped memory for nn_forward.1']
    %10 = vsyncpa [#allocation3], 0
    // Predicated region
    $region2: #{nn_forward.1} parent=1 // pred_check
      _
    $region3: #{nn_forward.1} parent=1 // pred_check_branch
      %12 = sbr.rel (0) target = $region5
    $region4: #{nn_forward.1} parent=1 // pred_region
      _
    $region5: #{nn_forward.1} parent=1 // pred_fallthru
      _
    // Predicated region
    $region6: #{nn_forward.1} parent=1 // pred_check
      _
    $region7: #{nn_forward.1} parent=1 // pred_check_branch
      %14 = sbr.rel (0) target = $region9
    $region8: #{nn_forward.1} parent=1 // pred_region
      _
    $region9: #{nn_forward.1} parent=1 // pred_fallthru
      _
    // Predicated region
    $region10: #{nn_forward.1} parent=1 // pred_check
      _
    $region11: #{nn_forward.1} parent=1 // pred_check_branch
      %16 = sbr.rel (0) target = $region13
    $region12: #{nn_forward.1} parent=1 // pred_region
      _
    $region13: #{nn_forward.1} parent=1 // pred_fallthru
      _
    // Predicated region
    $region14: #{nn_forward.1} parent=1 // pred_check
      _
    $region15: #{nn_forward.1} parent=1 // pred_check_branch
      %18 = sbr.rel (0) target = $region17
    $region16: #{nn_forward.1} parent=1 // pred_region
      _
    $region17: #{nn_forward.1} parent=1 // pred_fallthru
      _
    // Predicated region
    $region18: #{nn_forward.1} parent=1 // pred_check
      _
    $region19: #{nn_forward.1} parent=1 // pred_check_branch
      %20 = sbr.rel (0) target = $region21
    $region20: #{nn_forward.1} parent=1 // pred_region
      _
    $region21: #{nn_forward.1} parent=1 // pred_fallthru
      _
    %v21 = vld [vmem:[%s0] sm:$0xff]
    %v22 = vld [vmem:[%s1] sm:$0xff]
    %v23 = vld [vmem:[%s1 + $0x8] sm:$0xff]
    %v24 = vld [vmem:[%s1 + $0x10] sm:$0xff]
    %v25 = vld [vmem:[%s1 + $0x18] sm:$0xff]
    %v26 = vld [vmem:[%s1 + $0x20] sm:$0xff]
    %v27 = vld [vmem:[%s1 + $0x28] sm:$0xff]
    %v28 = vld [vmem:[%s1 + $0x30] sm:$0xff]
    %v29 = vld [vmem:[%s1 + $0x38] sm:$0xff]
    %v30 = vld [vmem:[%s2] sm:$0x1]
    %v32 = vperm.slane %v30, 0
    %vm34 = vcmask 523264
    %v36 = vsel %vm34, %v21, 0
    %38 = vmatpush.msra.mxu0 0.0
    %39 = vmatpush.msra.mxu0 0.0
    %40 = vmatpush.msra.mxu0 0.0
    %41 = vmatpush.msra.mxu0 0.0
    %42 = vmatpush.msra.mxu0 0.0
    %43 = vmatpush.msra.mxu0 0.0
    %44 = vmatpush.msra.mxu0 0.0
    %45 = vmatpush.msra.mxu0 0.0
    %46 = vmatpush.msra.mxu0 %v29
    %47 = vmatpush.msra.mxu0 %v28
    %48 = vmatpush.msra.mxu0 %v27
    %49 = vmatpush.msra.mxu0 %v26
    %50 = vmatpush.msra.mxu0 %v25
    %51 = vmatpush.msra.mxu0 %v24
    %52 = vmatpush.msra.mxu0 %v23
    %53 = vmatpush.msra.mxu0 %v22
    %54 = vmatmul.f32.gmra.mxu0 %v36
    %v55 = vpop.f32.mrf.mxu0
    %v56 = vadd.f32 %v32, %v55
    %57 = vdwg.mxu0
    %v58 = vmax.f32 %v56, 0.0
    %v59 = vld [vmem:[%s3] sm:$0xff]
    %v60 = vld [vmem:[%s3 + $0x8] sm:$0xff]
    %v61 = vld [vmem:[%s3 + $0x10] sm:$0xff]
    %v62 = vld [vmem:[%s3 + $0x18] sm:$0xff]
    %v63 = vld [vmem:[%s3 + $0x20] sm:$0xff]
    %v64 = vld [vmem:[%s3 + $0x28] sm:$0xff]
    %v65 = vld [vmem:[%s3 + $0x30] sm:$0xff]
    %v66 = vld [vmem:[%s3 + $0x38] sm:$0xff]
    %v67 = vld [vmem:[%s3 + $0x40] sm:$0xff]
    %v68 = vld [vmem:[%s3 + $0x48] sm:$0xff]
    %v69 = vld [vmem:[%s3 + $0x50] sm:$0xff]
    %v70 = vld [vmem:[%s3 + $0x58] sm:$0xff]
    %v71 = vld [vmem:[%s3 + $0x60] sm:$0xff]
    %v72 = vld [vmem:[%s3 + $0x68] sm:$0xff]
    %v73 = vld [vmem:[%s3 + $0x70] sm:$0xff]
    %v74 = vld [vmem:[%s3 + $0x78] sm:$0xff]
    %v75 = vld [vmem:[%s4] sm:$0x1]
    %v77 = vperm.slane %v75, 0
    %79 = vmatpush.msra.mxu0 %v74
    %80 = vmatpush.msra.mxu0 %v73
    %81 = vmatpush.msra.mxu0 %v72
    %82 = vmatpush.msra.mxu0 %v71
    %83 = vmatpush.msra.mxu0 %v70
    %84 = vmatpush.msra.mxu0 %v69
    %85 = vmatpush.msra.mxu0 %v68
    %86 = vmatpush.msra.mxu0 %v67
    %87 = vmatpush.msra.mxu0 %v66
    %88 = vmatpush.msra.mxu0 %v65
    %89 = vmatpush.msra.mxu0 %v64
    %90 = vmatpush.msra.mxu0 %v63
    %91 = vmatpush.msra.mxu0 %v62
    %92 = vmatpush.msra.mxu0 %v61
    %93 = vmatpush.msra.mxu0 %v60
    %94 = vmatpush.msra.mxu0 %v59
    %95 = vmatmul.f32.gmra.mxu0 %v58
    %v96 = vpop.f32.mrf.mxu0
    %v97 = vadd.f32 %v77, %v96
    %98 = vdwg.mxu0
    %99 = vst [vmem:[#allocation2] sm:$0xff] %v97
    // Predicated region
    $region22: #{nn_forward.1} parent=1 // pred_check
      _
    $region23: #{nn_forward.1} parent=1 // pred_check_branch
      %101 = sbr.rel (0) target = $region25
    $region24: #{nn_forward.1} parent=1 // pred_region
      %103 = vsyncadd [#allocation3], 0
      %s105 = sshll.u32 [#allocation2], 4
      %s106 = int_to_ptr.vmem [resolvable:$true] %s105
      %s107 = sshll.u32 %s5, 4
      %s108 = int_to_ptr.hbm [resolvable:$true] %s107
      %110 = dma.vmem_to_hbm [thread:$0]  %s106, 128, %s108, [#allocation3]
    $region25: #{nn_forward.1} parent=1 // pred_fallthru
      _
    // Predicated region
    $region26: #{nn_forward.1} parent=1 // pred_check
      _
    $region27: #{nn_forward.1} parent=1 // pred_check_branch
      %112 = sbr.rel (0) target = $region29
    $region28: #{nn_forward.1} parent=1 // pred_region
      %114 = dma.done [#allocation3], 128
    $region29: #{nn_forward.1} parent=1 // pred_fallthru
      _
    %115 = vsyncpa [#allocation3], 1

</llo_original>
